<compile_context>
chip_gen: v6e
topology: v6e:2x2x1
jax: 0.10.0
libtpu: 0.0.40
codegen_flags: <defaults>
</compile_context>

<pallas_src>
import functools
import math

import jax
import jax.numpy as jnp
from jax.experimental import pallas as pl
from jax.experimental.pallas import tpu as pltpu


def _round_up(x, mult):
    return ((x + mult - 1) // mult) * mult


def _mean_reduce_kernel(x_ref, o_ref, acc_ref, *, inv_n):
    """Row-wise mean over a feature axis tiled along grid axis 1.

    x_ref:   (tile_r, tile_n) input tile (any float dtype, upcast to f32)
    o_ref:   (tile_r, 1)      per-row result, written only on the last k step
    acc_ref: (tile_r, 128)    f32 lane-wise partial-sum accumulator (VMEM)
    """
    k = pl.program_id(1)

    @pl.when(k == 0)
    def _init():
        acc_ref[...] = jnp.zeros_like(acc_ref)

    # Lane-wise accumulation on the VPU: fold the tile's 128-lane columns
    # together.  Static, lane-aligned slices -> plain vector adds, no XLU
    # work and no cross-tile copies in the hot loop.
    tile_n = x_ref.shape[1]
    chunks = tile_n // 128
    partial = x_ref[:, 0:128].astype(jnp.float32)
    for c in range(1, chunks):
        partial = partial + x_ref[:, c * 128:(c + 1) * 128].astype(jnp.float32)
    acc_ref[...] += partial

    @pl.when(k == pl.num_programs(1) - 1)
    def _finalize():
        # One cross-lane reduce + scale; single (tiny) store per row block.
        row_sum = jnp.sum(acc_ref[...], axis=1, keepdims=True)  # (tile_r, 1)
        o_ref[...] = (row_sum * inv_n).astype(o_ref.dtype)


@jax.jit
def _dummy_reward_score_impl(pixels):
    """pixels: (B, C, H, W) float array -> (B,) per-batch mean."""
    b, c, h, w = pixels.shape
    n = c * h * w
    x = pixels.reshape(b, n)

    # --- Row packing: split each batch row into m packed rows so that the
    #     sublane dimension (rows) is a multiple of 8 where possible. -------
    m = 1
    need = 8 // math.gcd(b, 8)
    if need > 1 and n % need == 0:
        m = need
    rows = b * m
    n_per = n // m
    x = x.reshape(rows, n_per)

    # --- Row tiling (multiple of 8, <= 128 rows per block). ----------------
    tile_r = min(_round_up(rows, 8), 128)
    r_pad = _round_up(rows, tile_r)

    # --- Feature-axis tiling: lane-aligned, ~2 MiB per input block so the
    #     double-buffered pipeline stays well inside default scoped VMEM. ---
    itemsize = jnp.dtype(x.dtype).itemsize
    max_block_elems = (2 * 1024 * 1024) // itemsize
    lanes_cap = max(128, (max_block_elems // tile_r) // 128 * 128)
    tile_n = min(_round_up(n_per, 128), lanes_cap)
    n_pad = _round_up(n_per, tile_n)

    # Zero padding never affects the sums; we divide by the true N.
    if (r_pad, n_pad) != (rows, n_per):
        x = jnp.pad(x, ((0, r_pad - rows), (0, n_pad - n_per)))

    grid = (r_pad // tile_r, n_pad // tile_n)
    inv_n = 1.0 / float(n)

    kernel = functools.partial(_mean_reduce_kernel, inv_n=inv_n)

    out = pl.pallas_call(
        kernel,
        out_shape=jax.ShapeDtypeStruct((r_pad, 1), jnp.float32),
        grid_spec=pltpu.PrefetchScalarGridSpec(
            num_scalar_prefetch=0,
            grid=grid,
            in_specs=[pl.BlockSpec((tile_r, tile_n), lambda r, k: (r, k))],
            out_specs=pl.BlockSpec((tile_r, 1), lambda r, k: (r, 0)),
            scratch_shapes=[pltpu.VMEM((tile_r, 128), jnp.float32)],
        ),
        compiler_params=pltpu.CompilerParams(
            dimension_semantics=("parallel", "arbitrary"),
        ),
        cost_estimate=pl.CostEstimate(
            flops=r_pad * n_pad,
            transcendentals=0,
            bytes_accessed=r_pad * n_pad * itemsize + r_pad * 4,
        ),
    )(x)

    # Undo row packing / padding: each packed row already carries its
    # partial-sum / N, so summing the m packed rows gives the batch mean.
    scores = out[:rows, 0]
    if m > 1:
        scores = scores.reshape(b, m).sum(axis=1)
    return scores.astype(pixels.dtype)


def dummy_reward_score(pixels, prompts=None):
    del prompts  # unused by the reference module as well
    return _dummy_reward_score_impl(pixels)


class DummyReward:
    """JAX/Pallas port of the PyTorch DummyReward module (no parameters)."""

    def __call__(self, pixels, prompts=None):
        return self.score(pixels, prompts)

    def score(self, pixels, prompts=None):
        return dummy_reward_score(pixels, prompts)


if __name__ == "__main__":
    key = jax.random.PRNGKey(0)
    # small shapes consistent with the forward: pixels (b, c, h, w)
    pixels = jax.random.normal(key, (2, 4, 16, 16), dtype=jnp.float32)

    model = DummyReward()
    scores = model(pixels, prompts=["a cat", "a dog"])
    scores = jax.block_until_ready(scores)

    # sanity check against plain-JAX reference
    ref = jnp.mean(pixels, axis=(1, 2, 3))
    assert scores.shape == (2,)
    assert jnp.allclose(scores, ref, atol=1e-5, rtol=1e-5)

    # second check: odd shapes that exercise row/lane padding paths
    key2 = jax.random.PRNGKey(1)
    pixels2 = jax.random.normal(key2, (3, 3, 7, 5), dtype=jnp.float32)
    scores2 = jax.block_until_ready(model(pixels2))
    ref2 = jnp.mean(pixels2, axis=(1, 2, 3))
    assert scores2.shape == (3,)
    assert jnp.allclose(scores2, ref2, atol=1e-5, rtol=1e-5)

    print("KERNEL_OK")
</pallas_src>

<mosaic_0001>
module attributes {stable_mosaic.version = 11 : i64} {
  func.func @_mean_reduce_kernel(%arg0: i32, %arg1: i32, %arg2: memref<8x256xf32, #tpu.memory_space<vmem>>, %arg3: memref<8x1xf32, #tpu.memory_space<vmem>>, %arg4: memref<8x128xf32, #tpu.memory_space<vmem>>) attributes {dimension_semantics = [#tpu.dimension_semantics<parallel>, #tpu.dimension_semantics<arbitrary>], iteration_bounds = array<i64: 1, 1>, scalar_prefetch = 0 : i64, scratch_operands = 1 : i64, tpu.core_type = #tpu.core_type<tc>, window_params = [{transform_indices = @transform_0, window_bounds = array<i64: 8, 256>}, {transform_indices = @transform_1, window_bounds = array<i64: 8, 1>}]} {
    %c0_i32 = arith.constant 0 : i32
    %0 = arith.cmpi eq, %arg1, %c0_i32 : i32
    %1 = arith.extui %0 : i1 to i32
    %c0_i32_0 = arith.constant 0 : i32
    %2 = arith.cmpi ne, %1, %c0_i32_0 : i32
    scf.if %2 {
      %cst = arith.constant 0.000000e+00 : f32
      %12 = vector.broadcast %cst : f32 to vector<8x128xf32>
      %c0_9 = arith.constant 0 : index
      %c0_10 = arith.constant 0 : index
      %13 = vector.load %arg4[%c0_9, %c0_10] : memref<8x128xf32, #tpu.memory_space<vmem>>, vector<8x128xf32>
      tpu.vector_store %arg4[%c0_9, %c0_10], %12 {strides = array<i32>} : memref<8x128xf32, #tpu.memory_space<vmem>>, vector<8x128xf32>,
    } else {
    }
    %c0 = arith.constant 0 : index
    %c0_1 = arith.constant 0 : index
    %3 = vector.load %arg2[%c0, %c0_1] : memref<8x256xf32, #tpu.memory_space<vmem>>, vector<8x128xf32>
    %c0_2 = arith.constant 0 : index
    %c128 = arith.constant 128 : index
    %4 = vector.load %arg2[%c0_2, %c128] : memref<8x256xf32, #tpu.memory_space<vmem>>, vector<8x128xf32>
    %5 = arith.addf %3, %4 : vector<8x128xf32>
    %c0_3 = arith.constant 0 : index
    %c0_4 = arith.constant 0 : index
    %6 = vector.load %arg4[%c0_3, %c0_4] : memref<8x128xf32, #tpu.memory_space<vmem>>, vector<8x128xf32>
    %7 = arith.addf %6, %5 : vector<8x128xf32>
    %c0_5 = arith.constant 0 : index
    %c0_6 = arith.constant 0 : index
    %8 = vector.load %arg4[%c0_5, %c0_6] : memref<8x128xf32, #tpu.memory_space<vmem>>, vector<8x128xf32>
    tpu.vector_store %arg4[%c0_5, %c0_6], %7 {strides = array<i32>} : memref<8x128xf32, #tpu.memory_space<vmem>>, vector<8x128xf32>,
    %c0_i32_7 = arith.constant 0 : i32
    %9 = arith.cmpi eq, %arg1, %c0_i32_7 : i32
    %10 = arith.extui %9 : i1 to i32
    %c0_i32_8 = arith.constant 0 : i32
    %11 = arith.cmpi ne, %10, %c0_i32_8 : i32
    scf.if %11 {
      %c0_9 = arith.constant 0 : index
      %c0_10 = arith.constant 0 : index
      %12 = vector.load %arg4[%c0_9, %c0_10] : memref<8x128xf32, #tpu.memory_space<vmem>>, vector<8x128xf32>
      %cst = arith.constant dense<0.000000e+00> : vector<8xf32>
      %13 = vector.multi_reduction <add>, %12, %cst [1] : vector<8x128xf32> to vector<8xf32>
      %14 = vector.shape_cast %13 : vector<8xf32> to vector<8x1xf32>
      %cst_11 = arith.constant 9.765625E-4 : f32
      %15 = vector.broadcast %cst_11 : f32 to vector<8x1xf32>
      %16 = arith.mulf %14, %15 : vector<8x1xf32>
      %c0_12 = arith.constant 0 : index
      %c0_13 = arith.constant 0 : index
      %17 = vector.load %arg3[%c0_12, %c0_13] : memref<8x1xf32, #tpu.memory_space<vmem>>, vector<8x1xf32>
      tpu.vector_store %arg3[%c0_12, %c0_13], %16 {strides = array<i32>} : memref<8x1xf32, #tpu.memory_space<vmem>>, vector<8x1xf32>,
    } else {
    }
    return
  }
  func.func @transform_0(%arg0: i32, %arg1: i32) -> (i32, i32) {
    %c0_i32 = arith.constant 0 : i32
    return %arg0, %arg1 : i32, i32
  }
  func.func @transform_1(%arg0: i32, %arg1: i32) -> (i32, i32) {
    %c0_i32 = arith.constant 0 : i32
    %c0_i32_0 = arith.constant 0 : i32
    return %arg0, %c0_i32 : i32, i32
  }
}

</mosaic_0001>

<llo_original>
// kernel: squeeze.1
$region0: #{squeeze.1}
  %s0 = inlined_call_operand.vmem [shape: f32[8], index: 0, kind: input, shape index: {}]
  %s1 = inlined_call_operand.vmem [shape: f32[2,4], index: 1, kind: output, shape index: {}]
  $region1: #{squeeze.1} parent=0
    #allocation0 [shape = 'u8[4096]{0}', space=vmem, size = 0x1000, scoped, tag = 'scoped mem for output reshape']
    #allocation1 [shape = 'u8[4096]{0}', space=vmem, size = 0x1000, scoped, tag = 'scoped mem for input reshape']
    %s3 = sshll.u32 1, 1
    %s4 = ssub.s32 %s3, 1
    %v5 = vld [vmem:[%s0] sm:%s4]
    %6 = vst [vmem:[#allocation1] sm:%s4] %v5
    %v7 = vld [vmem:[#allocation1] sm:$0x1]
    %vm8 = vcmask 31744
    %9 = vst.msk [vmem:[#allocation0] sm:$0x1] %vm8, %v7
    %v10 = vld [vmem:[#allocation1] sm:$0x1]
    %11 = vrot.lane.b32.xlu0 %v10, 124
    %v12 = vpop.permute.xlu0 %11
    %vm13 = vcmask 31744
    %s14 = scalar_lea.vmem [#allocation0], 1
    %15 = vst.msk [vmem:[%s14] sm:$0x1] %vm13, %v12
    %s17 = sshll.u32 1, 2
    %s18 = ssub.s32 %s17, 1
    %v20 = vld [vmem:[#allocation0] sm:%s18]
    %s21 = sshll.u32 1, 2
    %s22 = ssub.s32 %s21, 1
    %23 = vst [vmem:[%s1] sm:%s22] %v20

// kernel: _dummy_reward_score_impl.1
$region0: #{_dummy_reward_score_impl.1}
  #allocation0 [shape = 'u32[]', space=smem, size = 0x4, offset = 0x4, fixed_abs, tag = 'smem constant byte address 0x4 - core index']
  #allocation1 [shape = 'u32[144,128]{1,0:T(1,128)}', space=vmem, size = 0x12000, scoped, tag = 'internal scratch']
  #allocation2 [shape = 'f32[8,128]{1,0:T(8,128)}', space=vmem, size = 0x1000, scoped, tag = 'scratch operand']
  %s0 = inlined_call_operand.vmem [shape: f32[8,256], index: 0, kind: input, shape index: {}]
  %s1 = inlined_call_operand.vmem [shape: f32[8,1], index: 1, kind: output, shape index: {}]
  %s2 = sld [smem:[#allocation0]]
  $region22: #{_dummy_reward_score_impl.1} parent=0
    _
  %s4 = ssub.s32 1, %s2
  %s5 = scalar_select 0, %s4, %s2
  // Predicated region
  $region2: #{_dummy_reward_score_impl.1} parent=0 // pred_check
    _
  $region3: #{_dummy_reward_score_impl.1} parent=0 // pred_check_branch
    %7 = sbr.rel (0) target = $region5
  $region4: #{_dummy_reward_score_impl.1} parent=0 // pred_region
    _
  $region5: #{_dummy_reward_score_impl.1} parent=0 // pred_fallthru
    _
  %p8 = scmp.eq.s32.totalorder 0, 0
  // Predicated region
  $region6: #{_dummy_reward_score_impl.1} parent=0 // pred_check
    %p9 = pneg %p8
  $region7: #{_dummy_reward_score_impl.1} parent=0 // pred_check_branch
    %11 = sbr.rel (%p9) target = $region9
  $region8: #{_dummy_reward_score_impl.1} parent=0 // pred_region
    %12 = vst [vmem:[#allocation2] sm:$0xff] 0.0
  $region9: #{_dummy_reward_score_impl.1} parent=0 // pred_fallthru
    _
  %v13 = vld [vmem:[%s0] sm:$0xff]
  %v14 = vld [vmem:[%s0 + $0x8] sm:$0xff]
  %v15 = vadd.f32 %v13, %v14
  %v16 = vld [vmem:[#allocation2] sm:$0xff]
  %v17 = vadd.f32 %v16, %v15
  %18 = vst [vmem:[#allocation2] sm:$0xff] %v17
  // Predicated region
  $region10: #{_dummy_reward_score_impl.1} parent=0 // pred_check
    %p19 = pneg %p8
  $region11: #{_dummy_reward_score_impl.1} parent=0 // pred_check_branch
    %21 = sbr.rel (%p19) target = $region13
  $region12: #{_dummy_reward_score_impl.1} parent=0 // pred_region
    %v22 = vld [vmem:[#allocation2] sm:$0xff]
    %23 = vadd.xlane.f32.xlu0 %v22
    %v24 = vpop.xlane.xlu0 %23
    %v25 = vmul.f32 %v24, 0.0009765625
    %vm26 = vcmask 7168
    %27 = vst.msk [vmem:[%s1] sm:$0xff] %vm26, %v25
  $region13: #{_dummy_reward_score_impl.1} parent=0 // pred_fallthru
    _
  // Predicated region
  $region14: #{_dummy_reward_score_impl.1} parent=0 // pred_check
    _
  $region15: #{_dummy_reward_score_impl.1} parent=0 // pred_check_branch
    %29 = sbr.rel (0) target = $region17
  $region16: #{_dummy_reward_score_impl.1} parent=0 // pred_region
    _
  $region17: #{_dummy_reward_score_impl.1} parent=0 // pred_fallthru
    _
  // Predicated region
  $region18: #{_dummy_reward_score_impl.1} parent=0 // pred_check
    _
  $region19: #{_dummy_reward_score_impl.1} parent=0 // pred_check_branch
    %31 = sbr.rel (0) target = $region21
  $region20: #{_dummy_reward_score_impl.1} parent=0 // pred_region
    _
  $region21: #{_dummy_reward_score_impl.1} parent=0 // pred_fallthru
    _

</llo_original>
